<compile_context>
chip_gen: v5e
topology: v5e:2x2
jax: 0.10.0
libtpu: 0.0.40
codegen_flags: <defaults>
</compile_context>

<pallas_src>
import functools

import jax
import jax.numpy as jnp
from jax.experimental import pallas as pl
from jax.experimental.pallas import tpu as pltpu


def _simpann_kernel(x_ref, w1_ref, b1_ref, w2_ref, b2_ref, w3_ref, b3_ref,
                    o_ref, *, compute_dtype):
    """Fused 3-layer MLP on one batch tile.

    x_ref  : [block_b, nx]   (native x dtype, streamed straight from HBM)
    w*_ref : [out, in]       (compute dtype, VMEM-resident across the grid)
    b*_ref : [out, 1]        (float32)
    o_ref  : [block_b, ny]   (x dtype, stored straight into the [B, ny] output)
    """
    # Batch-on-lanes compute layout: transpose the tile in-kernel (XLU slot is
    # otherwise idle) so every matmul / bias add / relu is lane-dense.
    xt = x_ref[...].T.astype(compute_dtype)                            # [nx, bb]

    # Layer 1: [hidden, nx] @ [nx, bb] -> [hidden, bb], f32 accumulation.
    h = jnp.dot(w1_ref[...], xt, preferred_element_type=jnp.float32)
    h = jnp.maximum(h + b1_ref[...], 0.0)

    # Layer 2 (cast activations to the MXU dtype only for the matmul).
    h = jnp.dot(w2_ref[...], h.astype(compute_dtype),
                preferred_element_type=jnp.float32)
    h = jnp.maximum(h + b2_ref[...], 0.0)

    # Layer 3.
    o = jnp.dot(w3_ref[...], h.astype(compute_dtype),
                preferred_element_type=jnp.float32)                    # [ny, bb]
    o = jnp.maximum(o + b3_ref[...], 0.0)

    # Back to the caller's [B, ny] layout (XLU). The narrow (ny-lane) stores
    # co-issue with the MXU-bound work and the writeback DMA is contiguous.
    # NOTE: on a ragged last tile the out-of-range rows hold garbage; Pallas
    # masks them on writeback. Do not add any batch-axis reduction in here.
    o_ref[...] = o.T.astype(o_ref.dtype)


def _round_up(v, m):
    return ((v + m - 1) // m) * m


@functools.partial(jax.jit, static_argnames=("block_b", "compute_dtype"))
def simpann_forward(x, w1, b1, w2, b2, w3, b3, *, block_b=4096,
                    compute_dtype=jnp.bfloat16):
    """SimpAnn forward.

    x  : [B, nx]                  (any float dtype; module interface)
    w1 : [hidden, nx]    b1: [hidden]    (torch nn.Linear layout)
    w2 : [hidden, hidden] b2: [hidden]
    w3 : [ny, hidden]    b3: [ny]
    returns [B, ny] in x.dtype.
    """
    B, nx = x.shape
    hidden = w1.shape[0]
    ny = w3.shape[0]

    # Tile selection:
    #  * big default tile (4096) -> amortizes ~0.35us/step, large contiguous
    #    DMA bursts, ~8 MiB VMEM working set (fine on v5e/v6e/v7x);
    #  * capped at round_up(cdiv(B,2),128) so a large batch always produces
    #    >= 2 grid steps (both v7x TensorCores via the "parallel" axis);
    #  * tiny batches get a single exact-size block (block dims == array dims
    #    is always a legal BlockSpec).
    if B <= 256:
        block_b = B
    else:
        block_b = max(128, min(block_b, _round_up(pl.cdiv(B, 2), 128)))
    grid = (pl.cdiv(B, block_b),)

    # Only the tiny weights/biases get a wrapper-side cast/reshape; x streams
    # in its native layout & dtype (the cast happens in-kernel) and the output
    # is produced directly in [B, ny] / x.dtype -- no extra HBM passes.
    w1c = w1.astype(compute_dtype)
    w2c = w2.astype(compute_dtype)
    w3c = w3.astype(compute_dtype)
    b1c = b1.reshape(hidden, 1).astype(jnp.float32)
    b2c = b2.reshape(hidden, 1).astype(jnp.float32)
    b3c = b3.reshape(ny, 1).astype(jnp.float32)

    const = lambda i: (0, 0)   # weights/biases: same whole-array block every step

    kernel = functools.partial(_simpann_kernel, compute_dtype=compute_dtype)

    out = pl.pallas_call(
        kernel,
        out_shape=jax.ShapeDtypeStruct((B, ny), x.dtype),
        grid=grid,
        in_specs=[
            pl.BlockSpec((block_b, nx), lambda i: (i, 0)),   # x batch tile (ragged last tile OK)
            pl.BlockSpec((hidden, nx), const),               # W1
            pl.BlockSpec((hidden, 1), const),                # b1
            pl.BlockSpec((hidden, hidden), const),           # W2
            pl.BlockSpec((hidden, 1), const),                # b2
            pl.BlockSpec((ny, hidden), const),               # W3
            pl.BlockSpec((ny, 1), const),                    # b3
        ],
        out_specs=pl.BlockSpec((block_b, ny), lambda i: (i, 0)),
        compiler_params=pltpu.CompilerParams(
            dimension_semantics=("parallel",)),
    )(x, w1c, b1c, w2c, b2c, w3c, b3c)

    return out


def init_linear_params(key, fan_in, fan_out):
    """torch.nn.Linear-style init: weight [out, in], bias [out], U(+/-1/sqrt(fan_in))."""
    kw, kb = jax.random.split(key)
    bound = 1.0 / (fan_in ** 0.5)
    w = jax.random.uniform(kw, (fan_out, fan_in), jnp.float32, -bound, bound)
    b = jax.random.uniform(kb, (fan_out,), jnp.float32, -bound, bound)
    return w, b


if __name__ == "__main__":
    # Small shapes consistent with SimpAnn(nx, ny, hiddenSize).
    nx, ny, hidden = 16, 8, 32
    batch = 300   # > 256 -> 2-step grid with a ragged last tile (exercises masking)

    key = jax.random.PRNGKey(0)
    kx, k1, k2, k3 = jax.random.split(key, 4)

    x = jax.random.normal(kx, (batch, nx), jnp.float32)
    w1, b1 = init_linear_params(k1, nx, hidden)      # i2h
    w2, b2 = init_linear_params(k2, hidden, hidden)  # h2h
    w3, b3 = init_linear_params(k3, hidden, ny)      # h2o

    hp = jax.lax.Precision.HIGHEST

    # --- bf16-streamed (fast) path -----------------------------------------
    out_bf16 = jax.block_until_ready(
        simpann_forward(x, w1, b1, w2, b2, w3, b3, compute_dtype=jnp.bfloat16))
    assert out_bf16.shape == (batch, ny)
    assert out_bf16.dtype == x.dtype

    # Reference mirroring the kernel's mixed precision (bf16 matmul inputs,
    # f32 accumulation / bias / relu).
    def c(a):
        return a.astype(jnp.bfloat16).astype(jnp.float32)

    ref = jnp.maximum(jnp.dot(c(x), c(w1).T, precision=hp) + b1, 0.0)
    ref = jnp.maximum(jnp.dot(c(ref), c(w2).T, precision=hp) + b2, 0.0)
    ref = jnp.maximum(jnp.dot(c(ref), c(w3).T, precision=hp) + b3, 0.0)
    assert jnp.allclose(out_bf16, ref, atol=2e-3, rtol=2e-3), "bf16 path mismatch"

    # --- exact-f32 path (torch semantics, up to accumulation order) ---------
    out_f32 = jax.block_until_ready(
        simpann_forward(x, w1, b1, w2, b2, w3, b3, compute_dtype=jnp.float32))
    ref32 = jnp.maximum(jnp.dot(x, w1.T, precision=hp) + b1, 0.0)
    ref32 = jnp.maximum(jnp.dot(ref32, w2.T, precision=hp) + b2, 0.0)
    ref32 = jnp.maximum(jnp.dot(ref32, w3.T, precision=hp) + b3, 0.0)
    assert jnp.allclose(out_f32, ref32, atol=1e-5, rtol=1e-5), "f32 path mismatch"

    print("KERNEL_OK")
</pallas_src>

<mosaic_0001>
module attributes {stable_mosaic.version = 11 : i64} {
  func.func @_simpann_kernel(%arg0: i32, %arg1: memref<256x16xf32, #tpu.memory_space<vmem>>, %arg2: memref<32x16xbf16, #tpu.memory_space<vmem>>, %arg3: memref<32x1xf32, #tpu.memory_space<vmem>>, %arg4: memref<32x32xbf16, #tpu.memory_space<vmem>>, %arg5: memref<32x1xf32, #tpu.memory_space<vmem>>, %arg6: memref<8x32xbf16, #tpu.memory_space<vmem>>, %arg7: memref<8x1xf32, #tpu.memory_space<vmem>>, %arg8: memref<256x8xf32, #tpu.memory_space<vmem>>) attributes {dimension_semantics = [#tpu.dimension_semantics<parallel>], iteration_bounds = array<i64: 2>, scalar_prefetch = 0 : i64, scratch_operands = 0 : i64, tpu.core_type = #tpu.core_type<tc>, window_params = [{transform_indices = @transform_0, window_bounds = array<i64: 256, 16>}, {pipeline_mode = #tpu.pipeline_mode<synchronous>, transform_indices = @transform_1, window_bounds = array<i64: 32, 16>}, {pipeline_mode = #tpu.pipeline_mode<synchronous>, transform_indices = @transform_2, window_bounds = array<i64: 32, 1>}, {pipeline_mode = #tpu.pipeline_mode<synchronous>, transform_indices = @transform_3, window_bounds = array<i64: 32, 32>}, {pipeline_mode = #tpu.pipeline_mode<synchronous>, transform_indices = @transform_4, window_bounds = array<i64: 32, 1>}, {pipeline_mode = #tpu.pipeline_mode<synchronous>, transform_indices = @transform_5, window_bounds = array<i64: 8, 32>}, {pipeline_mode = #tpu.pipeline_mode<synchronous>, transform_indices = @transform_6, window_bounds = array<i64: 8, 1>}, {transform_indices = @transform_7, window_bounds = array<i64: 256, 8>}]} {
    %c0 = arith.constant 0 : index
    %c0_0 = arith.constant 0 : index
    %0 = vector.load %arg1[%c0, %c0_0] : memref<256x16xf32, #tpu.memory_space<vmem>>, vector<256x16xf32>
    %1 = tpu.transpose %0, [1, 0] : vector<256x16xf32> -> vector<16x256xf32>
    %2 = arith.truncf %1 : vector<16x256xf32> to vector<16x256xbf16>
    %c0_1 = arith.constant 0 : index
    %c0_2 = arith.constant 0 : index
    %3 = vector.load %arg2[%c0_1, %c0_2] : memref<32x16xbf16, #tpu.memory_space<vmem>>, vector<32x16xbf16>
    %cst = arith.constant dense<0.000000e+00> : vector<32x256xf32>
    %4 = tpu.matmul %3, %2, %cst {dimension_numbers = #tpu.dot_dimension_numbers<[1], [0], [0], [1], [0, 0, 1, 1], [], []>} : vector<32x16xbf16>, vector<16x256xbf16>, vector<32x256xf32> -> vector<32x256xf32>
    %c0_3 = arith.constant 0 : index
    %c0_4 = arith.constant 0 : index
    %5 = vector.load %arg3[%c0_3, %c0_4] : memref<32x1xf32, #tpu.memory_space<vmem>>, vector<32x1xf32>
    %6 = vector.broadcast %5 : vector<32x1xf32> to vector<32x256xf32>
    %7 = arith.addf %4, %6 : vector<32x256xf32>
    %cst_5 = arith.constant 0.000000e+00 : f32
    %8 = vector.broadcast %cst_5 : f32 to vector<32x256xf32>
    %9 = arith.maximumf %7, %8 : vector<32x256xf32>
    %c0_6 = arith.constant 0 : index
    %c0_7 = arith.constant 0 : index
    %10 = vector.load %arg4[%c0_6, %c0_7] : memref<32x32xbf16, #tpu.memory_space<vmem>>, vector<32x32xbf16>
    %11 = arith.truncf %9 : vector<32x256xf32> to vector<32x256xbf16>
    %cst_8 = arith.constant dense<0.000000e+00> : vector<32x256xf32>
    %12 = tpu.matmul %10, %11, %cst_8 {dimension_numbers = #tpu.dot_dimension_numbers<[1], [0], [0], [1], [0, 0, 1, 1], [], []>} : vector<32x32xbf16>, vector<32x256xbf16>, vector<32x256xf32> -> vector<32x256xf32>
    %c0_9 = arith.constant 0 : index
    %c0_10 = arith.constant 0 : index
    %13 = vector.load %arg5[%c0_9, %c0_10] : memref<32x1xf32, #tpu.memory_space<vmem>>, vector<32x1xf32>
    %14 = vector.broadcast %13 : vector<32x1xf32> to vector<32x256xf32>
    %15 = arith.addf %12, %14 : vector<32x256xf32>
    %cst_11 = arith.constant 0.000000e+00 : f32
    %16 = vector.broadcast %cst_11 : f32 to vector<32x256xf32>
    %17 = arith.maximumf %15, %16 : vector<32x256xf32>
    %c0_12 = arith.constant 0 : index
    %c0_13 = arith.constant 0 : index
    %18 = vector.load %arg6[%c0_12, %c0_13] : memref<8x32xbf16, #tpu.memory_space<vmem>>, vector<8x32xbf16>
    %19 = arith.truncf %17 : vector<32x256xf32> to vector<32x256xbf16>
    %cst_14 = arith.constant dense<0.000000e+00> : vector<8x256xf32>
    %20 = tpu.matmul %18, %19, %cst_14 {dimension_numbers = #tpu.dot_dimension_numbers<[1], [0], [0], [1], [0, 0, 1, 1], [], []>} : vector<8x32xbf16>, vector<32x256xbf16>, vector<8x256xf32> -> vector<8x256xf32>
    %c0_15 = arith.constant 0 : index
    %c0_16 = arith.constant 0 : index
    %21 = vector.load %arg7[%c0_15, %c0_16] : memref<8x1xf32, #tpu.memory_space<vmem>>, vector<8x1xf32>
    %22 = vector.broadcast %21 : vector<8x1xf32> to vector<8x256xf32>
    %23 = arith.addf %20, %22 : vector<8x256xf32>
    %cst_17 = arith.constant 0.000000e+00 : f32
    %24 = vector.broadcast %cst_17 : f32 to vector<8x256xf32>
    %25 = arith.maximumf %23, %24 : vector<8x256xf32>
    %26 = tpu.transpose %25, [1, 0] : vector<8x256xf32> -> vector<256x8xf32>
    %c0_18 = arith.constant 0 : index
    %c0_19 = arith.constant 0 : index
    %27 = vector.load %arg8[%c0_18, %c0_19] : memref<256x8xf32, #tpu.memory_space<vmem>>, vector<256x8xf32>
    tpu.vector_store %arg8[%c0_18, %c0_19], %26 {strides = array<i32>} : memref<256x8xf32, #tpu.memory_space<vmem>>, vector<256x8xf32>,
    return
  }
  func.func @transform_0(%arg0: i32) -> (i32, i32) {
    %c0_i32 = arith.constant 0 : i32
    %c0_i32_0 = arith.constant 0 : i32
    return %arg0, %c0_i32 : i32, i32
  }
  func.func @transform_1(%arg0: i32) -> (i32, i32) {
    %c0_i32 = arith.constant 0 : i32
    %c0_i32_0 = arith.constant 0 : i32
    %c0_i32_1 = arith.constant 0 : i32
    return %c0_i32, %c0_i32_0 : i32, i32
  }
  func.func @transform_2(%arg0: i32) -> (i32, i32) {
    %c0_i32 = arith.constant 0 : i32
    %c0_i32_0 = arith.constant 0 : i32
    %c0_i32_1 = arith.constant 0 : i32
    return %c0_i32, %c0_i32_0 : i32, i32
  }
  func.func @transform_3(%arg0: i32) -> (i32, i32) {
    %c0_i32 = arith.constant 0 : i32
    %c0_i32_0 = arith.constant 0 : i32
    %c0_i32_1 = arith.constant 0 : i32
    return %c0_i32, %c0_i32_0 : i32, i32
  }
  func.func @transform_4(%arg0: i32) -> (i32, i32) {
    %c0_i32 = arith.constant 0 : i32
    %c0_i32_0 = arith.constant 0 : i32
    %c0_i32_1 = arith.constant 0 : i32
    return %c0_i32, %c0_i32_0 : i32, i32
  }
  func.func @transform_5(%arg0: i32) -> (i32, i32) {
    %c0_i32 = arith.constant 0 : i32
    %c0_i32_0 = arith.constant 0 : i32
    %c0_i32_1 = arith.constant 0 : i32
    return %c0_i32, %c0_i32_0 : i32, i32
  }
  func.func @transform_6(%arg0: i32) -> (i32, i32) {
    %c0_i32 = arith.constant 0 : i32
    %c0_i32_0 = arith.constant 0 : i32
    %c0_i32_1 = arith.constant 0 : i32
    return %c0_i32, %c0_i32_0 : i32, i32
  }
  func.func @transform_7(%arg0: i32) -> (i32, i32) {
    %c0_i32 = arith.constant 0 : i32
    %c0_i32_0 = arith.constant 0 : i32
    return %arg0, %c0_i32 : i32, i32
  }
}

</mosaic_0001>

<llo_original>
// kernel: simpann_forward.1
$region0: #{simpann_forward.1}
  #allocation0 [shape = 'u32[]', space=smem, size = 0x4, offset = 0x4, fixed_abs, tag = 'smem constant byte address 0x4 - core index']
  #allocation1 [shape = 'u32[72,128]{1,0:T(1,128)}', space=vmem, size = 0x9000, scoped, tag = 'internal scratch']
  %s0 = inlined_call_operand.vmem [shape: f32[300,16], index: 0, kind: input, shape index: {}]
  %s1 = inlined_call_operand.vmem [shape: bf16[32,16], index: 1, kind: input, shape index: {}]
  %s2 = inlined_call_operand.vmem [shape: f32[32,1], index: 2, kind: input, shape index: {}]
  %s3 = inlined_call_operand.vmem [shape: bf16[32,32], index: 3, kind: input, shape index: {}]
  %s4 = inlined_call_operand.vmem [shape: f32[32,1], index: 4, kind: input, shape index: {}]
  %s5 = inlined_call_operand.vmem [shape: bf16[8,32], index: 5, kind: input, shape index: {}]
  %s6 = inlined_call_operand.vmem [shape: f32[8,1], index: 6, kind: input, shape index: {}]
  %s7 = inlined_call_operand.vmem [shape: f32[300,8], index: 7, kind: output, shape index: {}]
  %s8 = sld [smem:[#allocation0]]
  $region109: #{simpann_forward.1} parent=0
    _
  %s10 = ssub.s32 1, %s8
  %s11 = scalar_select 0, %s10, %s8
  $region1: #{simpann_forward.1} parent=0
    #allocation2 [shape = 'u8[262144]{0}', space=vmem, size = 0x40000, scoped, tag = 'output window, operand 0']
    loop: start=0, step=1, limit=4
    $region2: #{simpann_forward.1} parent=1 // loop_pre_header
      _
    $region3: #{simpann_forward.1} parent=1 // loop_header
      %s13 = sphi 0, %s17
      %p14 = scmp.ge.s32.totalorder %s13, 4
      %s23 = sphi 0, %s25
      %s26 = sphi 0, %s23
      %s27 = sphi 0, %s26
      %s43 = sphi 0, %s27
      %s47 = sphi 0, %s47
      %s49 = sphi 0, %s47
      %s50 = sphi 0, %s49
      %s64 = sphi 0, %s50
      %s68 = sphi 0, %s68
      %s70 = sphi 0, %s68
      %s71 = sphi 0, %s70
      %s85 = sphi 0, %s71
      %s89 = sphi 0, %s89
      %s91 = sphi 0, %s89
      %s92 = sphi 0, %s91
      %s106 = sphi 0, %s92
      %s110 = sphi 0, %s110
      %s112 = sphi 0, %s110
      %s113 = sphi 0, %s112
      %s127 = sphi 0, %s113
      %s131 = sphi 0, %s131
      %s133 = sphi 0, %s131
      %s134 = sphi 0, %s133
      %s148 = sphi 0, %s134
      %s152 = sphi 0, %s152
      %s154 = sphi 0, %s152
      %s155 = sphi 0, %s154
      %s169 = sphi 0, %s155
      %s175 = sphi 0, %s177
      %s178 = sphi 0, %s175
      %s179 = sphi 0, %s178
      %s195 = sphi 0, %s179
    $region4: #{simpann_forward.1} parent=1 // loop_header_branch
      %16 = sbr.rel (%p14) target = $region8
    $region5: #{simpann_forward.1} parent=1 // loop_body
      %s18 = ssub.s32 %s13, 1
      %s19 = ssub.s32 %s13, 2
      %s20 = sadd.s32 %s13, 1
      %s21 = ssub.s32 %s13, %s20
      %p22 = scmp.eq.s32.totalorder %s21, 0
      %s24 = sadd.s32 %s23, 1
      %s25 = scalar_select %p22, %s23, %s24
      %p28 = pneg %p22
      %p29 = scmp.eq.s32.totalorder %s13, 1
      %p30 = por %p28, %p29
      %p31 = scmp.ne.s32.totalorder %s23, %s26
      %p32 = scmp.eq.s32.totalorder %s13, 0
      %p33 = por %p31, %p32
      %p34 = scmp.ne.s32.totalorder %s23, %s26
      %p35 = scmp.eq.s32.totalorder %s18, 1
      %p36 = por %p34, %p35
      %p37 = scmp.ne.s32.totalorder %s26, %s27
      %p38 = scmp.eq.s32.totalorder %s18, 0
      %p39 = por %p37, %p38
      %p40 = scmp.ne.s32.totalorder %s26, %s27
      %p41 = scmp.eq.s32.totalorder %s19, 1
      %p42 = por %p40, %p41
      %p44 = scmp.ne.s32.totalorder %s27, %s43
      %p45 = scmp.eq.s32.totalorder %s19, 0
      %p46 = por %p44, %p45
      %s48 = sadd.s32 %s47, 1
      %p51 = scmp.eq.s32.totalorder %s13, 1
      %p52 = scmp.ne.s32.totalorder %s47, %s49
      %p53 = scmp.eq.s32.totalorder %s13, 0
      %p54 = por %p52, %p53
      %p55 = scmp.ne.s32.totalorder %s47, %s49
      %p56 = scmp.eq.s32.totalorder %s18, 1
      %p57 = por %p55, %p56
      %p58 = scmp.ne.s32.totalorder %s49, %s50
      %p59 = scmp.eq.s32.totalorder %s18, 0
      %p60 = por %p58, %p59
      %p61 = scmp.ne.s32.totalorder %s49, %s50
      %p62 = scmp.eq.s32.totalorder %s19, 1
      %p63 = por %p61, %p62
      %p65 = scmp.ne.s32.totalorder %s50, %s64
      %p66 = scmp.eq.s32.totalorder %s19, 0
      %p67 = por %p65, %p66
      %s69 = sadd.s32 %s68, 1
      %p72 = scmp.eq.s32.totalorder %s13, 1
      %p73 = scmp.ne.s32.totalorder %s68, %s70
      %p74 = scmp.eq.s32.totalorder %s13, 0
      %p75 = por %p73, %p74
      %p76 = scmp.ne.s32.totalorder %s68, %s70
      %p77 = scmp.eq.s32.totalorder %s18, 1
      %p78 = por %p76, %p77
      %p79 = scmp.ne.s32.totalorder %s70, %s71
      %p80 = scmp.eq.s32.totalorder %s18, 0
      %p81 = por %p79, %p80
      %p82 = scmp.ne.s32.totalorder %s70, %s71
      %p83 = scmp.eq.s32.totalorder %s19, 1
      %p84 = por %p82, %p83
      %p86 = scmp.ne.s32.totalorder %s71, %s85
      %p87 = scmp.eq.s32.totalorder %s19, 0
      %p88 = por %p86, %p87
      %s90 = sadd.s32 %s89, 1
      %p93 = scmp.eq.s32.totalorder %s13, 1
      %p94 = scmp.ne.s32.totalorder %s89, %s91
      %p95 = scmp.eq.s32.totalorder %s13, 0
      %p96 = por %p94, %p95
      %p97 = scmp.ne.s32.totalorder %s89, %s91
      %p98 = scmp.eq.s32.totalorder %s18, 1
      %p99 = por %p97, %p98
      %p100 = scmp.ne.s32.totalorder %s91, %s92
      %p101 = scmp.eq.s32.totalorder %s18, 0
      %p102 = por %p100, %p101
      %p103 = scmp.ne.s32.totalorder %s91, %s92
      %p104 = scmp.eq.s32.totalorder %s19, 1
      %p105 = por %p103, %p104
      %p107 = scmp.ne.s32.totalorder %s92, %s106
      %p108 = scmp.eq.s32.totalorder %s19, 0
      %p109 = por %p107, %p108
      %s111 = sadd.s32 %s110, 1
      %p114 = scmp.eq.s32.totalorder %s13, 1
      %p115 = scmp.ne.s32.totalorder %s110, %s112
      %p116 = scmp.eq.s32.totalorder %s13, 0
      %p117 = por %p115, %p116
      %p118 = scmp.ne.s32.totalorder %s110, %s112
      %p119 = scmp.eq.s32.totalorder %s18, 1
      %p120 = por %p118, %p119
      %p121 = scmp.ne.s32.totalorder %s112, %s113
      %p122 = scmp.eq.s32.totalorder %s18, 0
      %p123 = por %p121, %p122
      %p124 = scmp.ne.s32.totalorder %s112, %s113
      %p125 = scmp.eq.s32.totalorder %s19, 1
      %p126 = por %p124, %p125
      %p128 = scmp.ne.s32.totalorder %s113, %s127
      %p129 = scmp.eq.s32.totalorder %s19, 0
      %p130 = por %p128, %p129
      %s132 = sadd.s32 %s131, 1
      %p135 = scmp.eq.s32.totalorder %s13, 1
      %p136 = scmp.ne.s32.totalorder %s131, %s133
      %p137 = scmp.eq.s32.totalorder %s13, 0
      %p138 = por %p136, %p137
      %p139 = scmp.ne.s32.totalorder %s131, %s133
      %p140 = scmp.eq.s32.totalorder %s18, 1
      %p141 = por %p139, %p140
      %p142 = scmp.ne.s32.totalorder %s133, %s134
      %p143 = scmp.eq.s32.totalorder %s18, 0
      %p144 = por %p142, %p143
      %p145 = scmp.ne.s32.totalorder %s133, %s134
      %p146 = scmp.eq.s32.totalorder %s19, 1
      %p147 = por %p145, %p146
      %p149 = scmp.ne.s32.totalorder %s134, %s148
      %p150 = scmp.eq.s32.totalorder %s19, 0
      %p151 = por %p149, %p150
      %s153 = sadd.s32 %s152, 1
      %p156 = scmp.eq.s32.totalorder %s13, 1
      %p157 = scmp.ne.s32.totalorder %s152, %s154
      %p158 = scmp.eq.s32.totalorder %s13, 0
      %p159 = por %p157, %p158
      %p160 = scmp.ne.s32.totalorder %s152, %s154
      %p161 = scmp.eq.s32.totalorder %s18, 1
      %p162 = por %p160, %p161
      %p163 = scmp.ne.s32.totalorder %s154, %s155
      %p164 = scmp.eq.s32.totalorder %s18, 0
      %p165 = por %p163, %p164
      %p166 = scmp.ne.s32.totalorder %s154, %s155
      %p167 = scmp.eq.s32.totalorder %s19, 1
      %p168 = por %p166, %p167
      %p170 = scmp.ne.s32.totalorder %s155, %s169
      %p171 = scmp.eq.s32.totalorder %s19, 0
      %p172 = por %p170, %p171
      %s173 = ssub.s32 %s13, %s20
      %p174 = scmp.eq.s32.totalorder %s173, 0
      %s176 = sadd.s32 %s175, 1
      %s177 = scalar_select %p174, %s175, %s176
      %p180 = pneg %p174
      %p181 = scmp.eq.s32.totalorder %s13, 1
      %p182 = por %p180, %p181
      %p183 = scmp.ne.s32.totalorder %s175, %s178
      %p184 = scmp.eq.s32.totalorder %s13, 0
      %p185 = por %p183, %p184
      %p186 = scmp.ne.s32.totalorder %s175, %s178
      %p187 = scmp.eq.s32.totalorder %s18, 1
      %p188 = por %p186, %p187
      %p189 = scmp.ne.s32.totalorder %s178, %s179
      %p190 = scmp.eq.s32.totalorder %s18, 0
      %p191 = por %p189, %p190
      %p192 = scmp.ne.s32.totalorder %s178, %s179
      %p193 = scmp.eq.s32.totalorder %s19, 1
      %p194 = por %p192, %p193
      %p196 = scmp.ne.s32.totalorder %s179, %s195
      %p197 = scmp.eq.s32.totalorder %s19, 0
      %p198 = por %p196, %p197
      %p199 = scmp.le.s32.totalorder 1, %s13
      %p200 = scmp.lt.s32.totalorder %s13, 3
      %p201 = pnand %p199, %p200
      %p202 = pneg %p201
      // Predicated region
      $region9: #{simpann_forward.1} parent=5 // pred_check
        _
      $region10: #{simpann_forward.1} parent=5 // pred_check_branch
        %204 = sbr.rel (%p201) target = $region12
      $region11: #{simpann_forward.1} parent=5 // pred_region
        %s205 = ssub.s32 %s13, 1
        // Predicated region
        $region13: #{simpann_forward.1} parent=11 // pred_check
          %p206 = pneg %p60
        $region14: #{simpann_forward.1} parent=11 // pred_check_branch
          %208 = sbr.rel (%p206) target = $region16
        $region15: #{simpann_forward.1} parent=11 // pred_region
          _
        $region16: #{simpann_forward.1} parent=11 // pred_fallthru
          _
        // Predicated region
        $region17: #{simpann_forward.1} parent=11 // pred_check
          %p209 = pneg %p81
        $region18: #{simpann_forward.1} parent=11 // pred_check_branch
          %211 = sbr.rel (%p209) target = $region20
        $region19: #{simpann_forward.1} parent=11 // pred_region
          _
        $region20: #{simpann_forward.1} parent=11 // pred_fallthru
          _
        // Predicated region
        $region21: #{simpann_forward.1} parent=11 // pred_check
          %p212 = pneg %p102
        $region22: #{simpann_forward.1} parent=11 // pred_check_branch
          %214 = sbr.rel (%p212) target = $region24
        $region23: #{simpann_forward.1} parent=11 // pred_region
          _
        $region24: #{simpann_forward.1} parent=11 // pred_fallthru
          _
        // Predicated region
        $region25: #{simpann_forward.1} parent=11 // pred_check
          %p215 = pneg %p123
        $region26: #{simpann_forward.1} parent=11 // pred_check_branch
          %217 = sbr.rel (%p215) target = $region28
        $region27: #{simpann_forward.1} parent=11 // pred_region
          _
        $region28: #{simpann_forward.1} parent=11 // pred_fallthru
          _
        // Predicated region
        $region29: #{simpann_forward.1} parent=11 // pred_check
          %p218 = pneg %p144
        $region30: #{simpann_forward.1} parent=11 // pred_check_branch
          %220 = sbr.rel (%p218) target = $region32
        $region31: #{simpann_forward.1} parent=11 // pred_region
          _
        $region32: #{simpann_forward.1} parent=11 // pred_fallthru
          _
        // Predicated region
        $region33: #{simpann_forward.1} parent=11 // pred_check
          %p221 = pneg %p165
        $region34: #{simpann_forward.1} parent=11 // pred_check_branch
          %223 = sbr.rel (%p221) target = $region36
        $region35: #{simpann_forward.1} parent=11 // pred_region
          _
        $region36: #{simpann_forward.1} parent=11 // pred_fallthru
          _
      $region12: #{simpann_forward.1} parent=5 // pred_fallthru
        _
      %p224 = scmp.lt.s32.totalorder %s13, 2
      // Predicated region
      $region37: #{simpann_forward.1} parent=5 // pred_check
        %p225 = pneg %p224
      $region38: #{simpann_forward.1} parent=5 // pred_check_branch
        %227 = sbr.rel (%p225) target = $region40
      $region39: #{simpann_forward.1} parent=5 // pred_region
        // Predicated region
        $region41: #{simpann_forward.1} parent=39 // pred_check
          %p228 = pneg %p33
        $region42: #{simpann_forward.1} parent=39 // pred_check_branch
          %230 = sbr.rel (%p228) target = $region44
        $region43: #{simpann_forward.1} parent=39 // pred_region
          %s231 = smul.u32 32, %s13
          %s232 = ssub.s32 38, %s231
          %p233 = scmp.lt.s32.totalorder %s232, 32
          %s234 = scalar_select %p233, %s232, 32
          %s235 = smul.u32 8, %s234
          %p236 = scmp.lt.s32.totalorder %s231, 37
          %s237 = scalar_select %p236, %s231, 37
          %s238 = smul.addr %s237, 8
          %s239 = scalar_lea.vmem %s0, %s238
          %s240 = smul.u32 32, %s13
          %s241 = ssub.s32 38, %s240
          %p242 = scmp.lt.s32.totalorder %s241, 32
          %s243 = scalar_select %p242, %s241, 32
          %s244 = smul.u32 8, %s243
        $region44: #{simpann_forward.1} parent=39 // pred_fallthru
          _
      $region40: #{simpann_forward.1} parent=5 // pred_fallthru
        _
      %p245 = scmp.le.s32.totalorder 1, %s13
      %p246 = scmp.lt.s32.totalorder %s13, 3
      %p247 = pnand %p245, %p246
      %p248 = pneg %p247
      // Predicated region
      $region45: #{simpann_forward.1} parent=5 // pred_check
        _
      $region46: #{simpann_forward.1} parent=5 // pred_check_branch
        %250 = sbr.rel (%p247) target = $region48
      $region47: #{simpann_forward.1} parent=5 // pred_region
        %s251 = ssub.s32 %s13, 1
        %s252 = smul.u32 32, %s18
        %s253 = ssub.s32 38, %s252
        %p254 = scmp.lt.s32.totalorder %s253, 32
        %s255 = scalar_select %p254, %s253, 32
        %s256 = smul.u32 8, %s255
        %p257 = scmp.lt.s32.totalorder %s252, 37
        %s258 = scalar_select %p257, %s252, 37
        %s259 = smul.addr %s258, 8
        %s260 = scalar_lea.vmem %s0, %s259
        %p261 = pneg %p39
        %p262 = pneg %p36
        %p263 = pneg %p60
        %p264 = pneg %p57
        %p265 = pneg %p81
        %p266 = pneg %p78
        %p267 = pneg %p102
        %p268 = pneg %p99
        %p269 = pneg %p123
        %p270 = pneg %p120
        %p271 = pneg %p144
        %p272 = pneg %p141
        %p273 = pneg %p165
        %p274 = pneg %p162
        %p275 = pneg %p191
        %p276 = pneg %p188
        %s277 = sand.u32 %s178, 1
        %s278 = sand.u32 %s178, 1
        %s279 = smul.addr %s278, 256
        %s280 = scalar_lea.vmem [#allocation2], %s279
        %s281 = smul.u32 32, %s18
        %s282 = ssub.s32 38, %s281
        %p283 = scmp.lt.s32.totalorder %s282, 32
        %s284 = scalar_select %p283, %s282, 32
        %s285 = smul.u32 8, %s284
        %p286 = scmp.lt.s32.totalorder %s281, 37
        %s287 = scalar_select %p286, %s281, 37
        %s288 = smul.addr %s287, 8
        %s289 = scalar_lea.vmem %s0, %s288
        %s290 = smul.u32 32, %s18
        %s291 = ssub.s32 38, %s290
        %p292 = scmp.lt.s32.totalorder %s291, 32
        %s293 = scalar_select %p292, %s291, 32
        %s294 = smul.u32 8, %s293
        %s295 = smul.u32 32, %s18
        %s296 = ssub.s32 38, %s295
        %p297 = scmp.lt.s32.totalorder %s296, 32
        %s298 = scalar_select %p297, %s296, 32
        %s299 = smul.u32 8, %s298
        %v301 = vld [vmem:[%s289] sm:$0xff]
        %v302 = vld [vmem:[%s289 + $0x8] sm:$0xff]
        %v303 = vld [vmem:[%s289 + $0x10] sm:$0xff]
        %v304 = vld [vmem:[%s289 + $0x18] sm:$0xff]
        %v305 = vld [vmem:[%s289 + $0x20] sm:$0xff]
        %v306 = vld [vmem:[%s289 + $0x28] sm:$0xff]
        %v307 = vld [vmem:[%s289 + $0x30] sm:$0xff]
        %v308 = vld [vmem:[%s289 + $0x38] sm:$0xff]
        %v309 = vld [vmem:[%s289 + $0x40] sm:$0xff]
        %v310 = vld [vmem:[%s289 + $0x48] sm:$0xff]
        %v311 = vld [vmem:[%s289 + $0x50] sm:$0xff]
        %v312 = vld [vmem:[%s289 + $0x58] sm:$0xff]
        %v313 = vld [vmem:[%s289 + $0x60] sm:$0xff]
        %v314 = vld [vmem:[%s289 + $0x68] sm:$0xff]
        %v315 = vld [vmem:[%s289 + $0x70] sm:$0xff]
        %v316 = vld [vmem:[%s289 + $0x78] sm:$0xff]
        %v317 = vld [vmem:[%s289 + $0x80] sm:$0xff]
        %v318 = vld [vmem:[%s289 + $0x88] sm:$0xff]
        %v319 = vld [vmem:[%s289 + $0x90] sm:$0xff]
        %v320 = vld [vmem:[%s289 + $0x98] sm:$0xff]
        %v321 = vld [vmem:[%s289 + $0xa0] sm:$0xff]
        %v322 = vld [vmem:[%s289 + $0xa8] sm:$0xff]
        %v323 = vld [vmem:[%s289 + $0xb0] sm:$0xff]
        %v324 = vld [vmem:[%s289 + $0xb8] sm:$0xff]
        %v325 = vld [vmem:[%s289 + $0xc0] sm:$0xff]
        %v326 = vld [vmem:[%s289 + $0xc8] sm:$0xff]
        %v327 = vld [vmem:[%s289 + $0xd0] sm:$0xff]
        %v328 = vld [vmem:[%s289 + $0xd8] sm:$0xff]
        %v329 = vld [vmem:[%s289 + $0xe0] sm:$0xff]
        %v330 = vld [vmem:[%s289 + $0xe8] sm:$0xff]
        %v331 = vld [vmem:[%s289 + $0xf0] sm:$0xff]
        %v332 = vld [vmem:[%s289 + $0xf8] sm:$0xff]
        %333 = vxpose.xlu0.b32.start [1/16] %v301, 128
        %334 = vxpose.xlu0.b32.cont [2/16] %v302, 128
        %335 = vxpose.xlu0.b32.cont [3/16] %v303, 128
        %336 = vxpose.xlu0.b32.cont [4/16] %v304, 128
        %337 = vxpose.xlu0.b32.cont [5/16] %v305, 128
        %338 = vxpose.xlu0.b32.cont [6/16] %v306, 128
        %339 = vxpose.xlu0.b32.cont [7/16] %v307, 128
        %340 = vxpose.xlu0.b32.cont [8/16] %v308, 128
        %341 = vxpose.xlu0.b32.cont [9/16] %v309, 128
        %342 = vxpose.xlu0.b32.cont [10/16] %v310, 128
        %343 = vxpose.xlu0.b32.cont [11/16] %v311, 128
        %344 = vxpose.xlu0.b32.cont [12/16] %v312, 128
        %345 = vxpose.xlu0.b32.cont [13/16] %v313, 128
        %346 = vxpose.xlu0.b32.cont [14/16] %v314, 128
        %347 = vxpose.xlu0.b32.cont [15/16] %v315, 128
        %348 = vxpose.xlu0.b32.end [16/16] %v316, 128
        %v349 = vpop.trf.xlu0
        %v350 = vpop.trf.xlu0
        %v351 = vpop.trf.xlu0
        %v352 = vpop.trf.xlu0
        %v353 = vpop.trf.xlu0
        %v354 = vpop.trf.xlu0
        %v355 = vpop.trf.xlu0
        %v356 = vpop.trf.xlu0
        %v357 = vpop.trf.xlu0
        %v358 = vpop.trf.xlu0
        %v359 = vpop.trf.xlu0
        %v360 = vpop.trf.xlu0
        %v361 = vpop.trf.xlu0
        %v362 = vpop.trf.xlu0
        %v363 = vpop.trf.xlu0
        %v364 = vpop.trf.xlu0
        %365 = vxpose.xlu0.b32.start [1/16] %v317, 128
        %366 = vxpose.xlu0.b32.cont [2/16] %v318, 128
        %367 = vxpose.xlu0.b32.cont [3/16] %v319, 128
        %368 = vxpose.xlu0.b32.cont [4/16] %v320, 128
        %369 = vxpose.xlu0.b32.cont [5/16] %v321, 128
        %370 = vxpose.xlu0.b32.cont [6/16] %v322, 128
        %371 = vxpose.xlu0.b32.cont [7/16] %v323, 128
        %372 = vxpose.xlu0.b32.cont [8/16] %v324, 128
        %373 = vxpose.xlu0.b32.cont [9/16] %v325, 128
        %374 = vxpose.xlu0.b32.cont [10/16] %v326, 128
        %375 = vxpose.xlu0.b32.cont [11/16] %v327, 128
        %376 = vxpose.xlu0.b32.cont [12/16] %v328, 128
        %377 = vxpose.xlu0.b32.cont [13/16] %v329, 128
        %378 = vxpose.xlu0.b32.cont [14/16] %v330, 128
        %379 = vxpose.xlu0.b32.cont [15/16] %v331, 128
        %380 = vxpose.xlu0.b32.end [16/16] %v332, 128
        %v381 = vpop.trf.xlu0
        %v382 = vpop.trf.xlu0
        %v383 = vpop.trf.xlu0
        %v384 = vpop.trf.xlu0
        %v385 = vpop.trf.xlu0
        %v386 = vpop.trf.xlu0
        %v387 = vpop.trf.xlu0
        %v388 = vpop.trf.xlu0
        %v389 = vpop.trf.xlu0
        %v390 = vpop.trf.xlu0
        %v391 = vpop.trf.xlu0
        %v392 = vpop.trf.xlu0
        %v393 = vpop.trf.xlu0
        %v394 = vpop.trf.xlu0
        %v395 = vpop.trf.xlu0
        %v396 = vpop.trf.xlu0
        %v397 = vpack.c.bf16 %v350, %v349
        %v398 = vpack.c.bf16 %v382, %v381
        %v399 = vld [vmem:[%s1] sm:$0xf]
        %v400 = vld [vmem:[%s1 + $0x4] sm:$0xf]
        %v401 = vld [vmem:[%s1 + $0x8] sm:$0xf]
        %v402 = vld [vmem:[%s1 + $0xc] sm:$0xf]
        %v403 = vld [vmem:[%s2] sm:$0xff]
        %v404 = vld [vmem:[%s2 + $0x8] sm:$0xff]
        %v405 = vld [vmem:[%s2 + $0x10] sm:$0xff]
        %v406 = vld [vmem:[%s2 + $0x18] sm:$0xff]
        %408 = vset.pattern.permute.xlu0 0
        %409 = vperm.xlu0 %408, %v403
        %v410 = vpop.permute.xlu0 %409
        %413 = vset.pattern.permute.xlu0 0
        %414 = vperm.xlu0 %413, %v404
        %v415 = vpop.permute.xlu0 %414
        %418 = vset.pattern.permute.xlu0 0
        %419 = vperm.xlu0 %418, %v405
        %v420 = vpop.permute.xlu0 %419
        %423 = vset.pattern.permute.xlu0 0
        %424 = vperm.xlu0 %423, %v406
        %v425 = vpop.permute.xlu0 %424
        %v431 = vunpack.c.l.b16 %v399
        %v432 = vunpack.c.l.b16 %v400
        %v433 = vunpack.c.l.b16 %v401
        %v434 = vunpack.c.l.b16 %v402
        %v435 = vpack.c.b16 %v432, %v431
        %v436 = vpack.c.b16 %v434, %v433
        %vm437 = vcmask 130048
        %v439 = vsel %vm437, %v435, 0
        %v442 = vsel %vm437, %v436, 0
        %444 = vmatpush.bf16.msra.mxu0 0
        %445 = vmatpush.bf16.msra.mxu0 0
        %446 = vmatpush.bf16.msra.mxu0 0
        %447 = vmatpush.bf16.msra.mxu0 0
        %448 = vmatpush.bf16.msra.mxu0 0
        %449 = vmatpush.bf16.msra.mxu0 0
        %450 = vmatpush.bf16.msra.mxu0 0
        %451 = vmatpush.bf16.msra.mxu0 %v397
        %452 = vmatmul.bf16.gmra.mxu0 %v439
        %v453 = vpop.f32.mrf.mxu0
        %v454 = vadd.f32 %v410, %v453
        %v455 = vpop.f32.mrf.mxu0
        %v456 = vadd.f32 %v415, %v455
        %457 = vmatmul.bf16.gmra.mxu0 %v442
        %v458 = vpop.f32.mrf.mxu0
        %v459 = vadd.f32 %v420, %v458
        %v460 = vpop.f32.mrf.mxu0
        %v461 = vadd.f32 %v425, %v460
        %462 = vdwg.mxu0
        %463 = vmatpush.bf16.msra.mxu0 0
        %464 = vmatpush.bf16.msra.mxu0 0
        %465 = vmatpush.bf16.msra.mxu0 0
        %466 = vmatpush.bf16.msra.mxu0 0
        %467 = vmatpush.bf16.msra.mxu0 0
        %468 = vmatpush.bf16.msra.mxu0 0
        %469 = vmatpush.bf16.msra.mxu0 0
        %470 = vmatpush.bf16.msra.mxu0 %v398
        %471 = vmatmul.bf16.gmra.mxu0 %v439
        %v472 = vpop.f32.mrf.mxu0
        %v473 = vadd.f32 %v410, %v472
        %v474 = vpop.f32.mrf.mxu0
        %v475 = vadd.f32 %v415, %v474
        %476 = vmatmul.bf16.gmra.mxu0 %v442
        %v477 = vpop.f32.mrf.mxu0
        %v478 = vadd.f32 %v420, %v477
        %v479 = vpop.f32.mrf.mxu0
        %v480 = vadd.f32 %v425, %v479
        %481 = vdwg.mxu0
        %v482 = vmax.f32 %v454, 0.0
        %v483 = vmax.f32 %v473, 0.0
        %v484 = vmax.f32 %v456, 0.0
        %v485 = vmax.f32 %v475, 0.0
        %v486 = vmax.f32 %v459, 0.0
        %v487 = vmax.f32 %v478, 0.0
        %v488 = vmax.f32 %v461, 0.0
        %v489 = vmax.f32 %v480, 0.0
        %v490 = vld [vmem:[%s3] sm:$0xf]
        %v491 = vld [vmem:[%s3 + $0x4] sm:$0xf]
        %v492 = vld [vmem:[%s3 + $0x8] sm:$0xf]
        %v493 = vld [vmem:[%s3 + $0xc] sm:$0xf]
        %v494 = vpack.c.bf16 %v484, %v482
        %v495 = vpack.c.bf16 %v485, %v483
        %v496 = vpack.c.bf16 %v488, %v486
        %v497 = vpack.c.bf16 %v489, %v487
        %v498 = vld [vmem:[%s4] sm:$0xff]
        %v499 = vld [vmem:[%s4 + $0x8] sm:$0xff]
        %v500 = vld [vmem:[%s4 + $0x10] sm:$0xff]
        %v501 = vld [vmem:[%s4 + $0x18] sm:$0xff]
        %503 = vset.pattern.permute.xlu0 0
        %504 = vperm.xlu0 %503, %v498
        %v505 = vpop.permute.xlu0 %504
        %508 = vset.pattern.permute.xlu0 0
        %509 = vperm.xlu0 %508, %v499
        %v510 = vpop.permute.xlu0 %509
        %513 = vset.pattern.permute.xlu0 0
        %514 = vperm.xlu0 %513, %v500
        %v515 = vpop.permute.xlu0 %514
        %518 = vset.pattern.permute.xlu0 0
        %519 = vperm.xlu0 %518, %v501
        %v520 = vpop.permute.xlu0 %519
        %v526 = vunpack.c.l.b16 %v490
        %v527 = vunpack.c.l.b16 %v491
        %v528 = vunpack.c.l.b16 %v492
        %v529 = vunpack.c.l.b16 %v493
        %v530 = vpack.c.b16 %v527, %v526
        %v531 = vpack.c.b16 %v529, %v528
        %vm532 = vcmask 261120
        %v534 = vsel %vm532, %v530, 0
        %v537 = vsel %vm532, %v531, 0
        %539 = vmatpush.bf16.msra.mxu0 0
        %540 = vmatpush.bf16.msra.mxu0 0
        %541 = vmatpush.bf16.msra.mxu0 0
        %542 = vmatpush.bf16.msra.mxu0 0
        %543 = vmatpush.bf16.msra.mxu0 0
        %544 = vmatpush.bf16.msra.mxu0 0
        %545 = vmatpush.bf16.msra.mxu0 %v496
        %546 = vmatpush.bf16.msra.mxu0 %v494
        %547 = vmatmul.bf16.gmra.mxu0 %v534
        %v548 = vpop.f32.mrf.mxu0
        %v549 = vadd.f32 %v505, %v548
        %v550 = vpop.f32.mrf.mxu0
        %v551 = vadd.f32 %v510, %v550
        %552 = vmatmul.bf16.gmra.mxu0 %v537
        %v553 = vpop.f32.mrf.mxu0
        %v554 = vadd.f32 %v515, %v553
        %v555 = vpop.f32.mrf.mxu0
        %v556 = vadd.f32 %v520, %v555
        %557 = vdwg.mxu0
        %558 = vmatpush.bf16.msra.mxu0 0
        %559 = vmatpush.bf16.msra.mxu0 0
        %560 = vmatpush.bf16.msra.mxu0 0
        %561 = vmatpush.bf16.msra.mxu0 0
        %562 = vmatpush.bf16.msra.mxu0 0
        %563 = vmatpush.bf16.msra.mxu0 0
        %564 = vmatpush.bf16.msra.mxu0 %v497
        %565 = vmatpush.bf16.msra.mxu0 %v495
        %566 = vmatmul.bf16.gmra.mxu0 %v534
        %v567 = vpop.f32.mrf.mxu0
        %v568 = vadd.f32 %v505, %v567
        %v569 = vpop.f32.mrf.mxu0
        %v570 = vadd.f32 %v510, %v569
        %571 = vmatmul.bf16.gmra.mxu0 %v537
        %v572 = vpop.f32.mrf.mxu0
        %v573 = vadd.f32 %v515, %v572
        %v574 = vpop.f32.mrf.mxu0
        %v575 = vadd.f32 %v520, %v574
        %576 = vdwg.mxu0
        %v577 = vmax.f32 %v549, 0.0
        %v578 = vmax.f32 %v568, 0.0
        %v579 = vmax.f32 %v551, 0.0
        %v580 = vmax.f32 %v570, 0.0
        %v581 = vmax.f32 %v554, 0.0
        %v582 = vmax.f32 %v573, 0.0
        %v583 = vmax.f32 %v556, 0.0
        %v584 = vmax.f32 %v575, 0.0
        %v585 = vld [vmem:[%s5] sm:$0xf]
        %v586 = vpack.c.bf16 %v579, %v577
        %v587 = vpack.c.bf16 %v580, %v578
        %v588 = vpack.c.bf16 %v583, %v581
        %v589 = vpack.c.bf16 %v584, %v582
        %v590 = vld [vmem:[%s6] sm:$0xff]
        %592 = vset.pattern.permute.xlu0 0
        %593 = vperm.xlu0 %592, %v590
        %v594 = vpop.permute.xlu0 %593
        %v597 = vsel %vm532, %v585, 0
        %599 = vmatpush.bf16.msra.mxu0 0
        %600 = vmatpush.bf16.msra.mxu0 0
        %601 = vmatpush.bf16.msra.mxu0 0
        %602 = vmatpush.bf16.msra.mxu0 0
        %603 = vmatpush.bf16.msra.mxu0 0
        %604 = vmatpush.bf16.msra.mxu0 0
        %605 = vmatpush.bf16.msra.mxu0 %v588
        %606 = vmatpush.bf16.msra.mxu0 %v586
        %607 = vmatmul.bf16.gmra.mxu0 %v597
        %v608 = vpop.f32.mrf.mxu0
        %v609 = vadd.f32 %v594, %v608
        %v610 = vpop.f32.mrf.mxu0
        %611 = vdwg.mxu0
        %612 = vmatpush.bf16.msra.mxu0 0
        %613 = vmatpush.bf16.msra.mxu0 0
        %614 = vmatpush.bf16.msra.mxu0 0
        %615 = vmatpush.bf16.msra.mxu0 0
        %616 = vmatpush.bf16.msra.mxu0 0
        %617 = vmatpush.bf16.msra.mxu0 0
        %618 = vmatpush.bf16.msra.mxu0 %v589
        %619 = vmatpush.bf16.msra.mxu0 %v587
        %620 = vmatmul.bf16.gmra.mxu0 %v597
        %v621 = vpop.f32.mrf.mxu0
        %v622 = vadd.f32 %v594, %v621
        %v623 = vpop.f32.mrf.mxu0
        %624 = vdwg.mxu0
        %v625 = vmax.f32 %v609, 0.0
        %v626 = vmax.f32 %v622, 0.0
        %627 = vxpose.xlu0.b32.start [1/16] %v625, 128
        %628 = vxpose.xlu0.b32.cont [2/16] 0.0, 128
        %629 = vxpose.xlu0.b32.cont [3/16] 0.0, 128
        %630 = vxpose.xlu0.b32.cont [4/16] 0.0, 128
        %631 = vxpose.xlu0.b32.cont [5/16] 0.0, 128
        %632 = vxpose.xlu0.b32.cont [6/16] 0.0, 128
        %633 = vxpose.xlu0.b32.cont [7/16] 0.0, 128
        %634 = vxpose.xlu0.b32.cont [8/16] 0.0, 128
        %635 = vxpose.xlu0.b32.cont [9/16] 0.0, 128
        %636 = vxpose.xlu0.b32.cont [10/16] 0.0, 128
        %637 = vxpose.xlu0.b32.cont [11/16] 0.0, 128
        %638 = vxpose.xlu0.b32.cont [12/16] 0.0, 128
        %639 = vxpose.xlu0.b32.cont [13/16] 0.0, 128
        %640 = vxpose.xlu0.b32.cont [14/16] 0.0, 128
        %641 = vxpose.xlu0.b32.cont [15/16] 0.0, 128
        %642 = vxpose.xlu0.b32.end [16/16] 0.0, 128
        %v643 = vpop.trf.xlu0
        %v644 = vpop.trf.xlu0
        %v645 = vpop.trf.xlu0
        %v646 = vpop.trf.xlu0
        %v647 = vpop.trf.xlu0
        %v648 = vpop.trf.xlu0
        %v649 = vpop.trf.xlu0
        %v650 = vpop.trf.xlu0
        %v651 = vpop.trf.xlu0
        %v652 = vpop.trf.xlu0
        %v653 = vpop.trf.xlu0
        %v654 = vpop.trf.xlu0
        %v655 = vpop.trf.xlu0
        %v656 = vpop.trf.xlu0
        %v657 = vpop.trf.xlu0
        %v658 = vpop.trf.xlu0
        %659 = vxpose.xlu0.b32.start [1/16] %v626, 128
        %660 = vxpose.xlu0.b32.cont [2/16] 0.0, 128
        %661 = vxpose.xlu0.b32.cont [3/16] 0.0, 128
        %662 = vxpose.xlu0.b32.cont [4/16] 0.0, 128
        %663 = vxpose.xlu0.b32.cont [5/16] 0.0, 128
        %664 = vxpose.xlu0.b32.cont [6/16] 0.0, 128
        %665 = vxpose.xlu0.b32.cont [7/16] 0.0, 128
        %666 = vxpose.xlu0.b32.cont [8/16] 0.0, 128
        %667 = vxpose.xlu0.b32.cont [9/16] 0.0, 128
        %668 = vxpose.xlu0.b32.cont [10/16] 0.0, 128
        %669 = vxpose.xlu0.b32.cont [11/16] 0.0, 128
        %670 = vxpose.xlu0.b32.cont [12/16] 0.0, 128
        %671 = vxpose.xlu0.b32.cont [13/16] 0.0, 128
        %672 = vxpose.xlu0.b32.cont [14/16] 0.0, 128
        %673 = vxpose.xlu0.b32.cont [15/16] 0.0, 128
        %674 = vxpose.xlu0.b32.end [16/16] 0.0, 128
        %v675 = vpop.trf.xlu0
        %v676 = vpop.trf.xlu0
        %v677 = vpop.trf.xlu0
        %v678 = vpop.trf.xlu0
        %v679 = vpop.trf.xlu0
        %v680 = vpop.trf.xlu0
        %v681 = vpop.trf.xlu0
        %v682 = vpop.trf.xlu0
        %v683 = vpop.trf.xlu0
        %v684 = vpop.trf.xlu0
        %v685 = vpop.trf.xlu0
        %v686 = vpop.trf.xlu0
        %v687 = vpop.trf.xlu0
        %v688 = vpop.trf.xlu0
        %v689 = vpop.trf.xlu0
        %v690 = vpop.trf.xlu0
        %vm691 = vcmask 64512
        %692 = vst.msk [vmem:[%s280] sm:$0xff] %vm691, %v643
        %693 = vst.msk [vmem:[%s280 + $0x8] sm:$0xff] %vm691, %v644
        %694 = vst.msk [vmem:[%s280 + $0x10] sm:$0xff] %vm691, %v645
        %695 = vst.msk [vmem:[%s280 + $0x18] sm:$0xff] %vm691, %v646
        %696 = vst.msk [vmem:[%s280 + $0x20] sm:$0xff] %vm691, %v647
        %697 = vst.msk [vmem:[%s280 + $0x28] sm:$0xff] %vm691, %v648
        %698 = vst.msk [vmem:[%s280 + $0x30] sm:$0xff] %vm691, %v649
        %699 = vst.msk [vmem:[%s280 + $0x38] sm:$0xff] %vm691, %v650
        %700 = vst.msk [vmem:[%s280 + $0x40] sm:$0xff] %vm691, %v651
        %701 = vst.msk [vmem:[%s280 + $0x48] sm:$0xff] %vm691, %v652
        %702 = vst.msk [vmem:[%s280 + $0x50] sm:$0xff] %vm691, %v653
        %703 = vst.msk [vmem:[%s280 + $0x58] sm:$0xff] %vm691, %v654
        %704 = vst.msk [vmem:[%s280 + $0x60] sm:$0xff] %vm691, %v655
        %705 = vst.msk [vmem:[%s280 + $0x68] sm:$0xff] %vm691, %v656
        %706 = vst.msk [vmem:[%s280 + $0x70] sm:$0xff] %vm691, %v657
        %707 = vst.msk [vmem:[%s280 + $0x78] sm:$0xff] %vm691, %v658
        %708 = vst.msk [vmem:[%s280 + $0x80] sm:$0xff] %vm691, %v675
        %709 = vst.msk [vmem:[%s280 + $0x88] sm:$0xff] %vm691, %v676
        %710 = vst.msk [vmem:[%s280 + $0x90] sm:$0xff] %vm691, %v677
        %711 = vst.msk [vmem:[%s280 + $0x98] sm:$0xff] %vm691, %v678
        %712 = vst.msk [vmem:[%s280 + $0xa0] sm:$0xff] %vm691, %v679
        %713 = vst.msk [vmem:[%s280 + $0xa8] sm:$0xff] %vm691, %v680
        %714 = vst.msk [vmem:[%s280 + $0xb0] sm:$0xff] %vm691, %v681
        %715 = vst.msk [vmem:[%s280 + $0xb8] sm:$0xff] %vm691, %v682
        %716 = vst.msk [vmem:[%s280 + $0xc0] sm:$0xff] %vm691, %v683
        %717 = vst.msk [vmem:[%s280 + $0xc8] sm:$0xff] %vm691, %v684
        %718 = vst.msk [vmem:[%s280 + $0xd0] sm:$0xff] %vm691, %v685
        %719 = vst.msk [vmem:[%s280 + $0xd8] sm:$0xff] %vm691, %v686
        %720 = vst.msk [vmem:[%s280 + $0xe0] sm:$0xff] %vm691, %v687
        %721 = vst.msk [vmem:[%s280 + $0xe8] sm:$0xff] %vm691, %v688
        %722 = vst.msk [vmem:[%s280 + $0xf0] sm:$0xff] %vm691, %v689
        %723 = vst.msk [vmem:[%s280 + $0xf8] sm:$0xff] %vm691, %v690
        %s724 = sand.u32 %s178, 1
        %s725 = sand.u32 %s178, 1
        %s726 = smul.addr %s725, 256
        %s727 = scalar_lea.vmem [#allocation2], %s726
        // Predicated region
        $region49: #{simpann_forward.1} parent=47 // pred_check
          %p728 = pneg %p188
        $region50: #{simpann_forward.1} parent=47 // pred_check_branch
          %730 = sbr.rel (%p728) target = $region52
        $region51: #{simpann_forward.1} parent=47 // pred_region
          %s731 = smul.u32 32, %s18
          %s732 = ssub.s32 38, %s731
          %p733 = scmp.lt.s32.totalorder %s732, 32
          %s734 = scalar_select %p733, %s732, 32
          %s735 = smul.u32 8, %s734
          %p736 = scmp.ne.s32.totalorder 0, %s735
          %s737 = smul.addr %s731, 8
          %s738 = scalar_lea.vmem %s7, %s737
          // Predicated region
          $region53: #{simpann_forward.1} parent=51 // pred_check
            %p739 = pneg %p736
          $region54: #{simpann_forward.1} parent=51 // pred_check_branch
            %741 = sbr.rel (%p739) target = $region56
          $region55: #{simpann_forward.1} parent=51 // pred_region
            // Predicated region
            $region57: #{simpann_forward.1} parent=55 // pred_check
              _
            $region58: #{simpann_forward.1} parent=55 // pred_check_branch
              %743 = sbr.rel (0) target = $region60
            $region59: #{simpann_forward.1} parent=55 // pred_region
              // Predicated region
              $region79: #{simpann_forward.1} parent=59 // pred_check
                _
              $region80: #{simpann_forward.1} parent=59 // pred_check_branch
                %855 = sbr.rel (0) target = $region82
              $region81: #{simpann_forward.1} parent=59 // pred_region
                %s856 = sshrl.u32 %s734, 5
                // While loop
                $region83: #{simpann_forward.1} parent=81 // loop_pre_header
                  _
                $region84: #{simpann_forward.1} parent=81 // loop_header
                  %s858 = sphi 0, %s860
                  %p859 = scmp.ge.s32.totalorder %s858, %s856
                  %s863 = sphi 0, %s932
                  %s864 = sphi %s727, %s935
                  %s865 = sphi %s738, %s936
                $region85: #{simpann_forward.1} parent=81 // loop_header_branch
                  %862 = sbr.rel (%p859) target = $region89
                $region86: #{simpann_forward.1} parent=81 // loop_body
                  %v866 = vld [vmem:[%s864] sm:$0xff]
                  %867 = vst [vmem:[%s865] sm:$0xff] %v866
                  %v868 = vld [vmem:[%s864 + $0x8] sm:$0xff]
                  %869 = vst [vmem:[%s865 + $0x8] sm:$0xff] %v868
                  %v870 = vld [vmem:[%s864 + $0x10] sm:$0xff]
                  %871 = vst [vmem:[%s865 + $0x10] sm:$0xff] %v870
                  %v872 = vld [vmem:[%s864 + $0x18] sm:$0xff]
                  %873 = vst [vmem:[%s865 + $0x18] sm:$0xff] %v872
                  %v874 = vld [vmem:[%s864 + $0x20] sm:$0xff]
                  %875 = vst [vmem:[%s865 + $0x20] sm:$0xff] %v874
                  %v876 = vld [vmem:[%s864 + $0x28] sm:$0xff]
                  %877 = vst [vmem:[%s865 + $0x28] sm:$0xff] %v876
                  %v878 = vld [vmem:[%s864 + $0x30] sm:$0xff]
                  %879 = vst [vmem:[%s865 + $0x30] sm:$0xff] %v878
                  %v880 = vld [vmem:[%s864 + $0x38] sm:$0xff]
                  %881 = vst [vmem:[%s865 + $0x38] sm:$0xff] %v880
                  %v882 = vld [vmem:[%s864 + $0x40] sm:$0xff]
                  %883 = vst [vmem:[%s865 + $0x40] sm:$0xff] %v882
                  %v884 = vld [vmem:[%s864 + $0x48] sm:$0xff]
                  %885 = vst [vmem:[%s865 + $0x48] sm:$0xff] %v884
                  %v886 = vld [vmem:[%s864 + $0x50] sm:$0xff]
                  %887 = vst [vmem:[%s865 + $0x50] sm:$0xff] %v886
                  %v888 = vld [vmem:[%s864 + $0x58] sm:$0xff]
                  %889 = vst [vmem:[%s865 + $0x58] sm:$0xff] %v888
                  %v890 = vld [vmem:[%s864 + $0x60] sm:$0xff]
                  %891 = vst [vmem:[%s865 + $0x60] sm:$0xff] %v890
                  %v892 = vld [vmem:[%s864 + $0x68] sm:$0xff]
                  %893 = vst [vmem:[%s865 + $0x68] sm:$0xff] %v892
                  %v894 = vld [vmem:[%s864 + $0x70] sm:$0xff]
                  %895 = vst [vmem:[%s865 + $0x70] sm:$0xff] %v894
                  %v896 = vld [vmem:[%s864 + $0x78] sm:$0xff]
                  %897 = vst [vmem:[%s865 + $0x78] sm:$0xff] %v896
                  %v898 = vld [vmem:[%s864 + $0x80] sm:$0xff]
                  %899 = vst [vmem:[%s865 + $0x80] sm:$0xff] %v898
                  %v900 = vld [vmem:[%s864 + $0x88] sm:$0xff]
                  %901 = vst [vmem:[%s865 + $0x88] sm:$0xff] %v900
                  %v902 = vld [vmem:[%s864 + $0x90] sm:$0xff]
                  %903 = vst [vmem:[%s865 + $0x90] sm:$0xff] %v902
                  %v904 = vld [vmem:[%s864 + $0x98] sm:$0xff]
                  %905 = vst [vmem:[%s865 + $0x98] sm:$0xff] %v904
                  %v906 = vld [vmem:[%s864 + $0xa0] sm:$0xff]
                  %907 = vst [vmem:[%s865 + $0xa0] sm:$0xff] %v906
                  %v908 = vld [vmem:[%s864 + $0xa8] sm:$0xff]
                  %909 = vst [vmem:[%s865 + $0xa8] sm:$0xff] %v908
                  %v910 = vld [vmem:[%s864 + $0xb0] sm:$0xff]
                  %911 = vst [vmem:[%s865 + $0xb0] sm:$0xff] %v910
                  %v912 = vld [vmem:[%s864 + $0xb8] sm:$0xff]
                  %913 = vst [vmem:[%s865 + $0xb8] sm:$0xff] %v912
                  %v914 = vld [vmem:[%s864 + $0xc0] sm:$0xff]
                  %915 = vst [vmem:[%s865 + $0xc0] sm:$0xff] %v914
                  %v916 = vld [vmem:[%s864 + $0xc8] sm:$0xff]
                  %917 = vst [vmem:[%s865 + $0xc8] sm:$0xff] %v916
                  %v918 = vld [vmem:[%s864 + $0xd0] sm:$0xff]
                  %919 = vst [vmem:[%s865 + $0xd0] sm:$0xff] %v918
                  %v920 = vld [vmem:[%s864 + $0xd8] sm:$0xff]
                  %921 = vst [vmem:[%s865 + $0xd8] sm:$0xff] %v920
                  %v922 = vld [vmem:[%s864 + $0xe0] sm:$0xff]
                  %923 = vst [vmem:[%s865 + $0xe0] sm:$0xff] %v922
                  %v924 = vld [vmem:[%s864 + $0xe8] sm:$0xff]
                  %925 = vst [vmem:[%s865 + $0xe8] sm:$0xff] %v924
                  %v926 = vld [vmem:[%s864 + $0xf0] sm:$0xff]
                  %927 = vst [vmem:[%s865 + $0xf0] sm:$0xff] %v926
                  %v928 = vld [vmem:[%s864 + $0xf8] sm:$0xff]
                  %929 = vst [vmem:[%s865 + $0xf8] sm:$0xff] %v928
                  %s930 = sadd.s32 1, %s863
                  %p931 = scmp.ge.s32.totalorder %s930, %s856
                  %s932 = scalar_select %p931, 0, %s930
                  %s933 = smul.u32 %s932, 256
                  %s934 = smul.u32 %s932, 256
                  %s935 = scalar_lea.vmem %s727, %s933 [#allocation2]
                  %s936 = scalar_lea.vmem %s738, %s934
                $region87: #{simpann_forward.1} parent=81 // loop_footer
                  %s860 = sadd.s32 %s858, 1
                $region88: #{simpann_forward.1} parent=81 // loop_footer_branch
                  %857 = sbr.rel target = $region84
                $region89: #{simpann_forward.1} parent=81 // loop_exit
                  _
                %s937 = sshrl.u32 %s734, 5
                %s938 = sand.u32 %s734, 31
                %s939 = smul.u32 %s937, 32
                %s940 = smul.u32 8, %s939
                %s941 = scalar_lea.vmem %s727, %s940 [#allocation2]
                %s942 = smul.u32 8, %s939
                %s943 = scalar_lea.vmem %s738, %s942
                // While loop
                $region90: #{simpann_forward.1} parent=81 // loop_pre_header
                  _
                $region91: #{simpann_forward.1} parent=81 // loop_header
                  %s945 = sphi 0, %s947
                  %p946 = scmp.ge.s32.totalorder %s945, %s938
                  %s950 = sphi 0, %s957
                  %s951 = sphi %s941, %s960
                  %s952 = sphi %s943, %s961
                $region92: #{simpann_forward.1} parent=81 // loop_header_branch
                  %949 = sbr.rel (%p946) target = $region96
                $region93: #{simpann_forward.1} parent=81 // loop_body
                  %v953 = vld [vmem:[%s951] sm:$0xff]
                  %954 = vst [vmem:[%s952] sm:$0xff] %v953
                  %s955 = sadd.s32 1, %s950
                  %p956 = scmp.ge.s32.totalorder %s955, %s938
                  %s957 = scalar_select %p956, 0, %s955
                  %s958 = smul.u32 %s957, 8
                  %s959 = smul.u32 %s957, 8
                  %s960 = scalar_lea.vmem %s941, %s958 [#allocation2]
                  %s961 = scalar_lea.vmem %s943, %s959
                $region94: #{simpann_forward.1} parent=81 // loop_footer
                  %s947 = sadd.s32 %s945, 1
                $region95: #{simpann_forward.1} parent=81 // loop_footer_branch
                  %944 = sbr.rel target = $region91
                $region96: #{simpann_forward.1} parent=81 // loop_exit
                  _
              $region82: #{simpann_forward.1} parent=59 // pred_fallthru
                _
              // Predicated region
              $region97: #{simpann_forward.1} parent=59 // pred_check
                _
              $region98: #{simpann_forward.1} parent=59 // pred_check_branch
                %963 = sbr.rel target = $region100
              $region99: #{simpann_forward.1} parent=59 // pred_region
                _
              $region100: #{simpann_forward.1} parent=59 // pred_fallthru
                _
            $region60: #{simpann_forward.1} parent=55 // pred_fallthru
              _
            // Predicated region
            $region61: #{simpann_forward.1} parent=55 // pred_check
              _
            $region62: #{simpann_forward.1} parent=55 // pred_check_branch
              %745 = sbr.rel target = $region64
            $region63: #{simpann_forward.1} parent=55 // pred_region
              %s747 = ssub.s32 256, 1
              %s748 = sshrl.u32 %s734, 5
              // While loop
              $region65: #{simpann_forward.1} parent=63 // loop_pre_header
                _
              $region66: #{simpann_forward.1} parent=63 // loop_header
                %s750 = sphi 0, %s752
                %p751 = scmp.ge.s32.totalorder %s750, %s748
                %s755 = sphi 0, %s824
                %s756 = sphi %s727, %s827
                %s757 = sphi %s738, %s828
              $region67: #{simpann_forward.1} parent=63 // loop_header_branch
                %754 = sbr.rel (%p751) target = $region71
              $region68: #{simpann_forward.1} parent=63 // loop_body
                %v758 = vld [vmem:[%s756] sm:%s747]
                %759 = vst [vmem:[%s757] sm:%s747] %v758
                %v760 = vld [vmem:[%s756 + $0x8] sm:%s747]
                %761 = vst [vmem:[%s757 + $0x8] sm:%s747] %v760
                %v762 = vld [vmem:[%s756 + $0x10] sm:%s747]
                %763 = vst [vmem:[%s757 + $0x10] sm:%s747] %v762
                %v764 = vld [vmem:[%s756 + $0x18] sm:%s747]
                %765 = vst [vmem:[%s757 + $0x18] sm:%s747] %v764
                %v766 = vld [vmem:[%s756 + $0x20] sm:%s747]
                %767 = vst [vmem:[%s757 + $0x20] sm:%s747] %v766
                %v768 = vld [vmem:[%s756 + $0x28] sm:%s747]
                %769 = vst [vmem:[%s757 + $0x28] sm:%s747] %v768
                %v770 = vld [vmem:[%s756 + $0x30] sm:%s747]
                %771 = vst [vmem:[%s757 + $0x30] sm:%s747] %v770
                %v772 = vld [vmem:[%s756 + $0x38] sm:%s747]
                %773 = vst [vmem:[%s757 + $0x38] sm:%s747] %v772
                %v774 = vld [vmem:[%s756 + $0x40] sm:%s747]
                %775 = vst [vmem:[%s757 + $0x40] sm:%s747] %v774
                %v776 = vld [vmem:[%s756 + $0x48] sm:%s747]
                %777 = vst [vmem:[%s757 + $0x48] sm:%s747] %v776
                %v778 = vld [vmem:[%s756 + $0x50] sm:%s747]
                %779 = vst [vmem:[%s757 + $0x50] sm:%s747] %v778
                %v780 = vld [vmem:[%s756 + $0x58] sm:%s747]
                %781 = vst [vmem:[%s757 + $0x58] sm:%s747] %v780
                %v782 = vld [vmem:[%s756 + $0x60] sm:%s747]
                %783 = vst [vmem:[%s757 + $0x60] sm:%s747] %v782
                %v784 = vld [vmem:[%s756 + $0x68] sm:%s747]
                %785 = vst [vmem:[%s757 + $0x68] sm:%s747] %v784
                %v786 = vld [vmem:[%s756 + $0x70] sm:%s747]
                %787 = vst [vmem:[%s757 + $0x70] sm:%s747] %v786
                %v788 = vld [vmem:[%s756 + $0x78] sm:%s747]
                %789 = vst [vmem:[%s757 + $0x78] sm:%s747] %v788
                %v790 = vld [vmem:[%s756 + $0x80] sm:%s747]
                %791 = vst [vmem:[%s757 + $0x80] sm:%s747] %v790
                %v792 = vld [vmem:[%s756 + $0x88] sm:%s747]
                %793 = vst [vmem:[%s757 + $0x88] sm:%s747] %v792
                %v794 = vld [vmem:[%s756 + $0x90] sm:%s747]
                %795 = vst [vmem:[%s757 + $0x90] sm:%s747] %v794
                %v796 = vld [vmem:[%s756 + $0x98] sm:%s747]
                %797 = vst [vmem:[%s757 + $0x98] sm:%s747] %v796
                %v798 = vld [vmem:[%s756 + $0xa0] sm:%s747]
                %799 = vst [vmem:[%s757 + $0xa0] sm:%s747] %v798
                %v800 = vld [vmem:[%s756 + $0xa8] sm:%s747]
                %801 = vst [vmem:[%s757 + $0xa8] sm:%s747] %v800
                %v802 = vld [vmem:[%s756 + $0xb0] sm:%s747]
                %803 = vst [vmem:[%s757 + $0xb0] sm:%s747] %v802
                %v804 = vld [vmem:[%s756 + $0xb8] sm:%s747]
                %805 = vst [vmem:[%s757 + $0xb8] sm:%s747] %v804
                %v806 = vld [vmem:[%s756 + $0xc0] sm:%s747]
                %807 = vst [vmem:[%s757 + $0xc0] sm:%s747] %v806
                %v808 = vld [vmem:[%s756 + $0xc8] sm:%s747]
                %809 = vst [vmem:[%s757 + $0xc8] sm:%s747] %v808
                %v810 = vld [vmem:[%s756 + $0xd0] sm:%s747]
                %811 = vst [vmem:[%s757 + $0xd0] sm:%s747] %v810
                %v812 = vld [vmem:[%s756 + $0xd8] sm:%s747]
                %813 = vst [vmem:[%s757 + $0xd8] sm:%s747] %v812
                %v814 = vld [vmem:[%s756 + $0xe0] sm:%s747]
                %815 = vst [vmem:[%s757 + $0xe0] sm:%s747] %v814
                %v816 = vld [vmem:[%s756 + $0xe8] sm:%s747]
                %817 = vst [vmem:[%s757 + $0xe8] sm:%s747] %v816
                %v818 = vld [vmem:[%s756 + $0xf0] sm:%s747]
                %819 = vst [vmem:[%s757 + $0xf0] sm:%s747] %v818
                %v820 = vld [vmem:[%s756 + $0xf8] sm:%s747]
                %821 = vst [vmem:[%s757 + $0xf8] sm:%s747] %v820
                %s822 = sadd.s32 1, %s755
                %p823 = scmp.ge.s32.totalorder %s822, %s748
                %s824 = scalar_select %p823, 0, %s822
                %s825 = smul.u32 %s824, 256
                %s826 = smul.u32 %s824, 256
                %s827 = scalar_lea.vmem %s727, %s825 [#allocation2]
                %s828 = scalar_lea.vmem %s738, %s826
              $region69: #{simpann_forward.1} parent=63 // loop_footer
                %s752 = sadd.s32 %s750, 1
              $region70: #{simpann_forward.1} parent=63 // loop_footer_branch
                %749 = sbr.rel target = $region66
              $region71: #{simpann_forward.1} parent=63 // loop_exit
                _
              %s829 = sshrl.u32 %s734, 5
              %s830 = sand.u32 %s734, 31
              %s831 = smul.u32 %s829, 32
              %s832 = smul.u32 8, %s831
              %s833 = scalar_lea.vmem %s727, %s832 [#allocation2]
              %s834 = smul.u32 8, %s831
              %s835 = scalar_lea.vmem %s738, %s834
              // While loop
              $region72: #{simpann_forward.1} parent=63 // loop_pre_header
                _
              $region73: #{simpann_forward.1} parent=63 // loop_header
                %s837 = sphi 0, %s839
                %p838 = scmp.ge.s32.totalorder %s837, %s830
                %s842 = sphi 0, %s849
                %s843 = sphi %s833, %s852
                %s844 = sphi %s835, %s853
              $region74: #{simpann_forward.1} parent=63 // loop_header_branch
                %841 = sbr.rel (%p838) target = $region78
              $region75: #{simpann_forward.1} parent=63 // loop_body
                %v845 = vld [vmem:[%s843] sm:%s747]
                %846 = vst [vmem:[%s844] sm:%s747] %v845
                %s847 = sadd.s32 1, %s842
                %p848 = scmp.ge.s32.totalorder %s847, %s830
                %s849 = scalar_select %p848, 0, %s847
                %s850 = smul.u32 %s849, 8
                %s851 = smul.u32 %s849, 8
                %s852 = scalar_lea.vmem %s833, %s850 [#allocation2]
                %s853 = scalar_lea.vmem %s835, %s851
              $region76: #{simpann_forward.1} parent=63 // loop_footer
                %s839 = sadd.s32 %s837, 1
              $region77: #{simpann_forward.1} parent=63 // loop_footer_branch
                %836 = sbr.rel target = $region73
              $region78: #{simpann_forward.1} parent=63 // loop_exit
                _
            $region64: #{simpann_forward.1} parent=55 // pred_fallthru
              _
          $region56: #{simpann_forward.1} parent=51 // pred_fallthru
            _
          %964 = vnop
        $region52: #{simpann_forward.1} parent=47 // pred_fallthru
          _
      $region48: #{simpann_forward.1} parent=5 // pred_fallthru
        _
      %p965 = scmp.le.s32.totalorder 2, %s13
      // Predicated region
      $region101: #{simpann_forward.1} parent=5 // pred_check
        %p966 = pneg %p965
      $region102: #{simpann_forward.1} parent=5 // pred_check_branch
        %968 = sbr.rel (%p966) target = $region104
      $region103: #{simpann_forward.1} parent=5 // pred_region
        %s969 = ssub.s32 %s13, 2
        // Predicated region
        $region105: #{simpann_forward.1} parent=103 // pred_check
          %p970 = pneg %p194
        $region106: #{simpann_forward.1} parent=103 // pred_check_branch
          %972 = sbr.rel (%p970) target = $region108
        $region107: #{simpann_forward.1} parent=103 // pred_region
          %s973 = sand.u32 %s179, 1
          %s974 = sand.u32 %s179, 1
          %s975 = smul.addr %s974, 256
          %s976 = scalar_lea.vmem [#allocation2], %s975
        $region108: #{simpann_forward.1} parent=103 // pred_fallthru
          _
      $region104: #{simpann_forward.1} parent=5 // pred_fallthru
        _
    $region6: #{simpann_forward.1} parent=1 // loop_footer
      %s17 = sadd.s32 1, %s13
    $region7: #{simpann_forward.1} parent=1 // loop_footer_branch
      %12 = sbr.rel target = $region3
    $region8: #{simpann_forward.1} parent=1 // loop_exit
      _

</llo_original>
